<compile_context>
chip_gen: v6e
topology: v6e:2x2x1
jax: 0.10.0
libtpu: 0.0.40
codegen_flags: <defaults>
</compile_context>

<pallas_src>
import jax
import jax.numpy as jnp
from jax.experimental import pallas as pl
from jax.experimental.pallas import tpu as pltpu

WINDOW = 3
PAD = WINDOW // 2
C1 = 0.01 ** 2
C2 = 0.03 ** 2
# 3x3 mean-pool normalization (1/9, 1/81) folded into the constants:
#   81^2 * SSIM_n = (2*Sx*Sy + 81*C1) * (18*Sxy - 2*Sx*Sy + 81*C2)
#   81^2 * SSIM_d = (Sx^2 + Sy^2 + 81*C1) * (9*(Sxx+Syy) - (Sx^2+Sy^2) + 81*C2)
_C1F = float((WINDOW * WINDOW) ** 2) * C1   # 81 * C1
_C2F = float((WINDOW * WINDOW) ** 2) * C2   # 81 * C2


def _pool9(a, H, W):
    """Separable 3x3 window *sum* of a reflection-padded block (B, H+2, W+2)."""
    # horizontal 3-tap (lane axis), then vertical 3-tap (sublane axis)
    h = a[:, :, 0:W] + a[:, :, 1:W + 1] + a[:, :, 2:W + 2]      # (B, H+2, W)
    return h[:, 0:H, :] + h[:, 1:H + 1, :] + h[:, 2:H + 2, :]   # (B, H, W)


def ssim_kernel(xp_ref, yp_ref, o_ref):
    # xp_ref / yp_ref: (B, H+2, W+2) reflection-padded planes (VMEM)
    # o_ref:           (B, H, W) SSIM-loss planes (VMEM)
    xp = xp_ref[...].astype(jnp.float32)
    yp = yp_ref[...].astype(jnp.float32)
    _, Hp, Wp = xp.shape
    H = Hp - 2 * PAD
    W = Wp - 2 * PAD

    # Raw 3x3 window sums (normalization folded into _C1F/_C2F).
    sx = _pool9(xp, H, W)
    sy = _pool9(yp, H, W)
    sxy = _pool9(xp * yp, H, W)

    # Numerator: consume sxy and sx*sy immediately.
    two_sxsy = 2.0 * (sx * sy)
    num = (two_sxsy + _C1F) * (18.0 * sxy - two_sxsy + _C2F)

    # Denominator.
    ss = sx * sx + sy * sy
    sxx_syy = _pool9(xp * xp, H, W) + _pool9(yp * yp, H, W)
    den = (ss + _C1F) * (9.0 * sxx_syy - ss + _C2F)

    # clamp((1 - SSIM) / 2, 0, 1)
    loss = 0.5 - 0.5 * num * pl.reciprocal(den, approx=False)
    o_ref[...] = jnp.clip(loss, 0.0, 1.0).astype(o_ref.dtype)


def _plane_block(nc, hp, wp):
    """Planes per grid step: amortize step overhead, keep >=2 grid steps when
    possible (v7x 2-TC split), stay well inside scoped VMEM."""
    max_b = max(1, (8 * 1024 * 1024) // (hp * wp * 4 * 12))
    best = 1
    for b in (2, 4, 8, 16, 32):
        if b <= max_b and nc % b == 0 and nc // b >= 2:
            best = b
    return best


def ssim_loss(x, y):
    """x, y: NCHW float arrays. Returns clamp((1 - SSIM)/2, 0, 1), shape NCHW."""
    N, C, H, W = x.shape
    NC = N * C
    Hp, Wp = H + 2 * PAD, W + 2 * PAD

    xr = x.reshape(NC, H, W)
    yr = y.reshape(NC, H, W)
    # ReflectionPad2d(1) == jnp.pad mode='reflect' (edge excluded)
    xp = jnp.pad(xr, ((0, 0), (PAD, PAD), (PAD, PAD)), mode="reflect")
    yp = jnp.pad(yr, ((0, 0), (PAD, PAD), (PAD, PAD)), mode="reflect")

    B = _plane_block(NC, Hp, Wp)
    grid = (NC // B,)

    out = pl.pallas_call(
        ssim_kernel,
        out_shape=jax.ShapeDtypeStruct((NC, H, W), x.dtype),
        grid_spec=pltpu.PrefetchScalarGridSpec(
            num_scalar_prefetch=0,
            grid=grid,
            in_specs=[
                pl.BlockSpec((B, Hp, Wp), lambda i: (i, 0, 0)),
                pl.BlockSpec((B, Hp, Wp), lambda i: (i, 0, 0)),
            ],
            out_specs=pl.BlockSpec((B, H, W), lambda i: (i, 0, 0)),
        ),
        compiler_params=pltpu.CompilerParams(
            dimension_semantics=("parallel",),
        ),
    )(xp, yp)
    return out.reshape(N, C, H, W)


def _ssim_ref(x, y):
    # pure-JAX reference (unfolded math), for correctness check
    xp = jnp.pad(x, ((0, 0), (0, 0), (PAD, PAD), (PAD, PAD)), mode="reflect")
    yp = jnp.pad(y, ((0, 0), (0, 0), (PAD, PAD), (PAD, PAD)), mode="reflect")

    def pool(a):
        return jax.lax.reduce_window(
            a, 0.0, jax.lax.add, (1, 1, WINDOW, WINDOW), (1, 1, 1, 1), "VALID"
        ) / (WINDOW * WINDOW)

    mu_x, mu_y = pool(xp), pool(yp)
    sx = pool(xp * xp) - mu_x * mu_x
    sy = pool(yp * yp) - mu_y * mu_y
    sxy = pool(xp * yp) - mu_x * mu_y
    n = (2 * mu_x * mu_y + C1) * (2 * sxy + C2)
    d = (mu_x ** 2 + mu_y ** 2 + C1) * (sx + sy + C2)
    return jnp.clip((1 - n / d) / 2, 0.0, 1.0)


if __name__ == "__main__":
    key = jax.random.PRNGKey(0)
    kx, ky = jax.random.split(key)
    shape = (2, 4, 16, 16)  # N, C, H, W
    x = jax.random.uniform(kx, shape, dtype=jnp.float32)
    y = jax.random.uniform(ky, shape, dtype=jnp.float32)

    out = jax.block_until_ready(ssim_loss(x, y))
    ref = jax.block_until_ready(_ssim_ref(x, y))
    assert out.shape == shape
    err = float(jnp.max(jnp.abs(out - ref)))
    assert jnp.allclose(out, ref, rtol=1e-4, atol=1e-5), err
    print("KERNEL_OK")
</pallas_src>

<mosaic_0001>
module attributes {stable_mosaic.version = 11 : i64} {
  func.func @ssim_kernel(%arg0: i32, %arg1: memref<4x18x18xf32, #tpu.memory_space<vmem>>, %arg2: memref<4x18x18xf32, #tpu.memory_space<vmem>>, %arg3: memref<4x16x16xf32, #tpu.memory_space<vmem>>) attributes {dimension_semantics = [#tpu.dimension_semantics<parallel>], iteration_bounds = array<i64: 2>, scalar_prefetch = 0 : i64, scratch_operands = 0 : i64, tpu.core_type = #tpu.core_type<tc>, window_params = [{transform_indices = @transform_0, window_bounds = array<i64: 4, 18, 18>}, {transform_indices = @transform_1, window_bounds = array<i64: 4, 18, 18>}, {transform_indices = @transform_2, window_bounds = array<i64: 4, 16, 16>}]} {
    %c0 = arith.constant 0 : index
    %c0_0 = arith.constant 0 : index
    %c0_1 = arith.constant 0 : index
    %0 = vector.load %arg1[%c0, %c0_0, %c0_1] : memref<4x18x18xf32, #tpu.memory_space<vmem>>, vector<4x18x18xf32>
    %c0_2 = arith.constant 0 : index
    %c0_3 = arith.constant 0 : index
    %c0_4 = arith.constant 0 : index
    %1 = vector.load %arg2[%c0_2, %c0_3, %c0_4] : memref<4x18x18xf32, #tpu.memory_space<vmem>>, vector<4x18x18xf32>
    %2 = vector.extract_strided_slice %0 {offsets = [0, 0, 0], sizes = [4, 18, 16], strides = [1, 1, 1]} : vector<4x18x18xf32> to vector<4x18x16xf32>
    %3 = vector.extract_strided_slice %0 {offsets = [0, 0, 1], sizes = [4, 18, 16], strides = [1, 1, 1]} : vector<4x18x18xf32> to vector<4x18x16xf32>
    %4 = arith.addf %2, %3 : vector<4x18x16xf32>
    %5 = vector.extract_strided_slice %0 {offsets = [0, 0, 2], sizes = [4, 18, 16], strides = [1, 1, 1]} : vector<4x18x18xf32> to vector<4x18x16xf32>
    %6 = arith.addf %4, %5 : vector<4x18x16xf32>
    %7 = vector.extract_strided_slice %6 {offsets = [0, 0, 0], sizes = [4, 16, 16], strides = [1, 1, 1]} : vector<4x18x16xf32> to vector<4x16x16xf32>
    %8 = vector.extract_strided_slice %6 {offsets = [0, 1, 0], sizes = [4, 16, 16], strides = [1, 1, 1]} : vector<4x18x16xf32> to vector<4x16x16xf32>
    %9 = arith.addf %7, %8 : vector<4x16x16xf32>
    %10 = vector.extract_strided_slice %6 {offsets = [0, 2, 0], sizes = [4, 16, 16], strides = [1, 1, 1]} : vector<4x18x16xf32> to vector<4x16x16xf32>
    %11 = arith.addf %9, %10 : vector<4x16x16xf32>
    %12 = vector.extract_strided_slice %1 {offsets = [0, 0, 0], sizes = [4, 18, 16], strides = [1, 1, 1]} : vector<4x18x18xf32> to vector<4x18x16xf32>
    %13 = vector.extract_strided_slice %1 {offsets = [0, 0, 1], sizes = [4, 18, 16], strides = [1, 1, 1]} : vector<4x18x18xf32> to vector<4x18x16xf32>
    %14 = arith.addf %12, %13 : vector<4x18x16xf32>
    %15 = vector.extract_strided_slice %1 {offsets = [0, 0, 2], sizes = [4, 18, 16], strides = [1, 1, 1]} : vector<4x18x18xf32> to vector<4x18x16xf32>
    %16 = arith.addf %14, %15 : vector<4x18x16xf32>
    %17 = vector.extract_strided_slice %16 {offsets = [0, 0, 0], sizes = [4, 16, 16], strides = [1, 1, 1]} : vector<4x18x16xf32> to vector<4x16x16xf32>
    %18 = vector.extract_strided_slice %16 {offsets = [0, 1, 0], sizes = [4, 16, 16], strides = [1, 1, 1]} : vector<4x18x16xf32> to vector<4x16x16xf32>
    %19 = arith.addf %17, %18 : vector<4x16x16xf32>
    %20 = vector.extract_strided_slice %16 {offsets = [0, 2, 0], sizes = [4, 16, 16], strides = [1, 1, 1]} : vector<4x18x16xf32> to vector<4x16x16xf32>
    %21 = arith.addf %19, %20 : vector<4x16x16xf32>
    %22 = arith.mulf %0, %1 : vector<4x18x18xf32>
    %23 = vector.extract_strided_slice %22 {offsets = [0, 0, 0], sizes = [4, 18, 16], strides = [1, 1, 1]} : vector<4x18x18xf32> to vector<4x18x16xf32>
    %24 = vector.extract_strided_slice %22 {offsets = [0, 0, 1], sizes = [4, 18, 16], strides = [1, 1, 1]} : vector<4x18x18xf32> to vector<4x18x16xf32>
    %25 = arith.addf %23, %24 : vector<4x18x16xf32>
    %26 = vector.extract_strided_slice %22 {offsets = [0, 0, 2], sizes = [4, 18, 16], strides = [1, 1, 1]} : vector<4x18x18xf32> to vector<4x18x16xf32>
    %27 = arith.addf %25, %26 : vector<4x18x16xf32>
    %28 = vector.extract_strided_slice %27 {offsets = [0, 0, 0], sizes = [4, 16, 16], strides = [1, 1, 1]} : vector<4x18x16xf32> to vector<4x16x16xf32>
    %29 = vector.extract_strided_slice %27 {offsets = [0, 1, 0], sizes = [4, 16, 16], strides = [1, 1, 1]} : vector<4x18x16xf32> to vector<4x16x16xf32>
    %30 = arith.addf %28, %29 : vector<4x16x16xf32>
    %31 = vector.extract_strided_slice %27 {offsets = [0, 2, 0], sizes = [4, 16, 16], strides = [1, 1, 1]} : vector<4x18x16xf32> to vector<4x16x16xf32>
    %32 = arith.addf %30, %31 : vector<4x16x16xf32>
    %33 = arith.mulf %11, %21 : vector<4x16x16xf32>
    %cst = arith.constant 2.000000e+00 : f32
    %34 = vector.broadcast %cst : f32 to vector<4x16x16xf32>
    %35 = arith.mulf %34, %33 : vector<4x16x16xf32>
    %cst_5 = arith.constant 8.100000e-03 : f32
    %36 = vector.broadcast %cst_5 : f32 to vector<4x16x16xf32>
    %37 = arith.addf %35, %36 : vector<4x16x16xf32>
    %cst_6 = arith.constant 1.800000e+01 : f32
    %38 = vector.broadcast %cst_6 : f32 to vector<4x16x16xf32>
    %39 = arith.mulf %38, %32 : vector<4x16x16xf32>
    %40 = arith.subf %39, %35 : vector<4x16x16xf32>
    %cst_7 = arith.constant 7.290000e-02 : f32
    %41 = vector.broadcast %cst_7 : f32 to vector<4x16x16xf32>
    %42 = arith.addf %40, %41 : vector<4x16x16xf32>
    %43 = arith.mulf %37, %42 : vector<4x16x16xf32>
    %44 = arith.mulf %11, %11 : vector<4x16x16xf32>
    %45 = arith.mulf %21, %21 : vector<4x16x16xf32>
    %46 = arith.addf %44, %45 : vector<4x16x16xf32>
    %47 = arith.mulf %0, %0 : vector<4x18x18xf32>
    %48 = vector.extract_strided_slice %47 {offsets = [0, 0, 0], sizes = [4, 18, 16], strides = [1, 1, 1]} : vector<4x18x18xf32> to vector<4x18x16xf32>
    %49 = vector.extract_strided_slice %47 {offsets = [0, 0, 1], sizes = [4, 18, 16], strides = [1, 1, 1]} : vector<4x18x18xf32> to vector<4x18x16xf32>
    %50 = arith.addf %48, %49 : vector<4x18x16xf32>
    %51 = vector.extract_strided_slice %47 {offsets = [0, 0, 2], sizes = [4, 18, 16], strides = [1, 1, 1]} : vector<4x18x18xf32> to vector<4x18x16xf32>
    %52 = arith.addf %50, %51 : vector<4x18x16xf32>
    %53 = vector.extract_strided_slice %52 {offsets = [0, 0, 0], sizes = [4, 16, 16], strides = [1, 1, 1]} : vector<4x18x16xf32> to vector<4x16x16xf32>
    %54 = vector.extract_strided_slice %52 {offsets = [0, 1, 0], sizes = [4, 16, 16], strides = [1, 1, 1]} : vector<4x18x16xf32> to vector<4x16x16xf32>
    %55 = arith.addf %53, %54 : vector<4x16x16xf32>
    %56 = vector.extract_strided_slice %52 {offsets = [0, 2, 0], sizes = [4, 16, 16], strides = [1, 1, 1]} : vector<4x18x16xf32> to vector<4x16x16xf32>
    %57 = arith.addf %55, %56 : vector<4x16x16xf32>
    %58 = arith.mulf %1, %1 : vector<4x18x18xf32>
    %59 = vector.extract_strided_slice %58 {offsets = [0, 0, 0], sizes = [4, 18, 16], strides = [1, 1, 1]} : vector<4x18x18xf32> to vector<4x18x16xf32>
    %60 = vector.extract_strided_slice %58 {offsets = [0, 0, 1], sizes = [4, 18, 16], strides = [1, 1, 1]} : vector<4x18x18xf32> to vector<4x18x16xf32>
    %61 = arith.addf %59, %60 : vector<4x18x16xf32>
    %62 = vector.extract_strided_slice %58 {offsets = [0, 0, 2], sizes = [4, 18, 16], strides = [1, 1, 1]} : vector<4x18x18xf32> to vector<4x18x16xf32>
    %63 = arith.addf %61, %62 : vector<4x18x16xf32>
    %64 = vector.extract_strided_slice %63 {offsets = [0, 0, 0], sizes = [4, 16, 16], strides = [1, 1, 1]} : vector<4x18x16xf32> to vector<4x16x16xf32>
    %65 = vector.extract_strided_slice %63 {offsets = [0, 1, 0], sizes = [4, 16, 16], strides = [1, 1, 1]} : vector<4x18x16xf32> to vector<4x16x16xf32>
    %66 = arith.addf %64, %65 : vector<4x16x16xf32>
    %67 = vector.extract_strided_slice %63 {offsets = [0, 2, 0], sizes = [4, 16, 16], strides = [1, 1, 1]} : vector<4x18x16xf32> to vector<4x16x16xf32>
    %68 = arith.addf %66, %67 : vector<4x16x16xf32>
    %69 = arith.addf %57, %68 : vector<4x16x16xf32>
    %cst_8 = arith.constant 8.100000e-03 : f32
    %70 = vector.broadcast %cst_8 : f32 to vector<4x16x16xf32>
    %71 = arith.addf %46, %70 : vector<4x16x16xf32>
    %cst_9 = arith.constant 9.000000e+00 : f32
    %72 = vector.broadcast %cst_9 : f32 to vector<4x16x16xf32>
    %73 = arith.mulf %72, %69 : vector<4x16x16xf32>
    %74 = arith.subf %73, %46 : vector<4x16x16xf32>
    %cst_10 = arith.constant 7.290000e-02 : f32
    %75 = vector.broadcast %cst_10 : f32 to vector<4x16x16xf32>
    %76 = arith.addf %74, %75 : vector<4x16x16xf32>
    %77 = arith.mulf %71, %76 : vector<4x16x16xf32>
    %cst_11 = arith.constant 5.000000e-01 : f32
    %78 = vector.broadcast %cst_11 : f32 to vector<4x16x16xf32>
    %79 = arith.mulf %78, %43 : vector<4x16x16xf32>
    %80 = tpu.reciprocal %77 : vector<4x16x16xf32> -> vector<4x16x16xf32>
    %81 = arith.mulf %79, %80 : vector<4x16x16xf32>
    %cst_12 = arith.constant 5.000000e-01 : f32
    %82 = vector.broadcast %cst_12 : f32 to vector<4x16x16xf32>
    %83 = arith.subf %82, %81 : vector<4x16x16xf32>
    %cst_13 = arith.constant 0.000000e+00 : f32
    %cst_14 = arith.constant 1.000000e+00 : f32
    %84 = vector.broadcast %cst_13 : f32 to vector<4x16x16xf32>
    %85 = arith.maximumf %84, %83 : vector<4x16x16xf32>
    %86 = vector.broadcast %cst_14 : f32 to vector<4x16x16xf32>
    %87 = arith.minimumf %86, %85 : vector<4x16x16xf32>
    %c0_15 = arith.constant 0 : index
    %c0_16 = arith.constant 0 : index
    %c0_17 = arith.constant 0 : index
    %88 = vector.load %arg3[%c0_15, %c0_16, %c0_17] : memref<4x16x16xf32, #tpu.memory_space<vmem>>, vector<4x16x16xf32>
    tpu.vector_store %arg3[%c0_15, %c0_16, %c0_17], %87 {strides = array<i32>} : memref<4x16x16xf32, #tpu.memory_space<vmem>>, vector<4x16x16xf32>,
    return
  }
  func.func @transform_0(%arg0: i32) -> (i32, i32, i32) {
    %c0_i32 = arith.constant 0 : i32
    %c0_i32_0 = arith.constant 0 : i32
    %c0_i32_1 = arith.constant 0 : i32
    return %arg0, %c0_i32, %c0_i32_0 : i32, i32, i32
  }
  func.func @transform_1(%arg0: i32) -> (i32, i32, i32) {
    %c0_i32 = arith.constant 0 : i32
    %c0_i32_0 = arith.constant 0 : i32
    %c0_i32_1 = arith.constant 0 : i32
    return %arg0, %c0_i32, %c0_i32_0 : i32, i32, i32
  }
  func.func @transform_2(%arg0: i32) -> (i32, i32, i32) {
    %c0_i32 = arith.constant 0 : i32
    %c0_i32_0 = arith.constant 0 : i32
    %c0_i32_1 = arith.constant 0 : i32
    return %arg0, %c0_i32, %c0_i32_0 : i32, i32, i32
  }
}

</mosaic_0001>

<llo_original>
// kernel: tpu_custom_call.1
$region0: #{tpu_custom_call.1}
  #allocation0 [shape = 'u32[]', space=smem, size = 0x4, offset = 0x4, fixed_abs, tag = 'smem constant byte address 0x4 - core index']
  #allocation1 [shape = 'u32[144,128]{1,0:T(1,128)}', space=vmem, size = 0x12000, scoped, tag = 'internal scratch']
  %s0 = inlined_call_operand.vmem [shape: f32[8,18,18], index: 0, kind: input, shape index: {}]
  %s1 = inlined_call_operand.vmem [shape: f32[8,18,18], index: 1, kind: input, shape index: {}]
  %s2 = inlined_call_operand.hbm [shape: f32[8,16,16], index: 2, kind: output, shape index: {}]
  %s3 = sld [smem:[#allocation0]]
  $region41: #{tpu_custom_call.1} parent=0
    _
  %s5 = ssub.s32 1, %s3
  %s6 = scalar_select 0, %s5, %s3
  $region1: #{tpu_custom_call.1} parent=0
    #allocation2 [shape = 'u8[65536]{0}', space=vmem, size = 0x10000, scoped, tag = 'output window, operand 0']
    #allocation3 [shape = 's32[2]{0}', space=sflag, size = 0x8, scoped, tag = 'scoped memory for tpu_custom_call.1']
    %7 = vsyncpa [#allocation3], 0
    %s8 = scalar_lea.sflag [#allocation3], 1
    %9 = vsyncpa %s8, 0
    loop: start=0, step=1, limit=4
    $region2: #{tpu_custom_call.1} parent=1 // loop_pre_header
      _
    $region3: #{tpu_custom_call.1} parent=1 // loop_header
      %s11 = sphi 0, %s15
      %p12 = scmp.ge.s32.totalorder %s11, 4
      %s21 = sphi 0, %s23
      %s24 = sphi 0, %s21
      %s25 = sphi 0, %s24
      %s41 = sphi 0, %s25
      %s47 = sphi 0, %s49
      %s50 = sphi 0, %s47
      %s51 = sphi 0, %s50
      %s67 = sphi 0, %s51
      %s73 = sphi 0, %s75
      %s76 = sphi 0, %s73
      %s77 = sphi 0, %s76
      %s93 = sphi 0, %s77
    $region4: #{tpu_custom_call.1} parent=1 // loop_header_branch
      %14 = sbr.rel (%p12) target = $region8
    $region5: #{tpu_custom_call.1} parent=1 // loop_body
      %s16 = ssub.s32 %s11, 1
      %s17 = ssub.s32 %s11, 2
      %s18 = sadd.s32 %s11, 1
      %s19 = ssub.s32 %s11, %s18
      %p20 = scmp.eq.s32.totalorder %s19, 0
      %s22 = sadd.s32 %s21, 1
      %s23 = scalar_select %p20, %s21, %s22
      %p26 = pneg %p20
      %p27 = scmp.eq.s32.totalorder %s11, 1
      %p28 = por %p26, %p27
      %p29 = scmp.ne.s32.totalorder %s21, %s24
      %p30 = scmp.eq.s32.totalorder %s11, 0
      %p31 = por %p29, %p30
      %p32 = scmp.ne.s32.totalorder %s21, %s24
      %p33 = scmp.eq.s32.totalorder %s16, 1
      %p34 = por %p32, %p33
      %p35 = scmp.ne.s32.totalorder %s24, %s25
      %p36 = scmp.eq.s32.totalorder %s16, 0
      %p37 = por %p35, %p36
      %p38 = scmp.ne.s32.totalorder %s24, %s25
      %p39 = scmp.eq.s32.totalorder %s17, 1
      %p40 = por %p38, %p39
      %p42 = scmp.ne.s32.totalorder %s25, %s41
      %p43 = scmp.eq.s32.totalorder %s17, 0
      %p44 = por %p42, %p43
      %s45 = ssub.s32 %s11, %s18
      %p46 = scmp.eq.s32.totalorder %s45, 0
      %s48 = sadd.s32 %s47, 1
      %s49 = scalar_select %p46, %s47, %s48
      %p52 = pneg %p46
      %p53 = scmp.eq.s32.totalorder %s11, 1
      %p54 = por %p52, %p53
      %p55 = scmp.ne.s32.totalorder %s47, %s50
      %p56 = scmp.eq.s32.totalorder %s11, 0
      %p57 = por %p55, %p56
      %p58 = scmp.ne.s32.totalorder %s47, %s50
      %p59 = scmp.eq.s32.totalorder %s16, 1
      %p60 = por %p58, %p59
      %p61 = scmp.ne.s32.totalorder %s50, %s51
      %p62 = scmp.eq.s32.totalorder %s16, 0
      %p63 = por %p61, %p62
      %p64 = scmp.ne.s32.totalorder %s50, %s51
      %p65 = scmp.eq.s32.totalorder %s17, 1
      %p66 = por %p64, %p65
      %p68 = scmp.ne.s32.totalorder %s51, %s67
      %p69 = scmp.eq.s32.totalorder %s17, 0
      %p70 = por %p68, %p69
      %s71 = ssub.s32 %s11, %s18
      %p72 = scmp.eq.s32.totalorder %s71, 0
      %s74 = sadd.s32 %s73, 1
      %s75 = scalar_select %p72, %s73, %s74
      %p78 = pneg %p72
      %p79 = scmp.eq.s32.totalorder %s11, 1
      %p80 = por %p78, %p79
      %p81 = scmp.ne.s32.totalorder %s73, %s76
      %p82 = scmp.eq.s32.totalorder %s11, 0
      %p83 = por %p81, %p82
      %p84 = scmp.ne.s32.totalorder %s73, %s76
      %p85 = scmp.eq.s32.totalorder %s16, 1
      %p86 = por %p84, %p85
      %p87 = scmp.ne.s32.totalorder %s76, %s77
      %p88 = scmp.eq.s32.totalorder %s16, 0
      %p89 = por %p87, %p88
      %p90 = scmp.ne.s32.totalorder %s76, %s77
      %p91 = scmp.eq.s32.totalorder %s17, 1
      %p92 = por %p90, %p91
      %p94 = scmp.ne.s32.totalorder %s77, %s93
      %p95 = scmp.eq.s32.totalorder %s17, 0
      %p96 = por %p94, %p95
      %p97 = scmp.le.s32.totalorder 1, %s11
      %p98 = scmp.lt.s32.totalorder %s11, 3
      %p99 = pnand %p97, %p98
      %p100 = pneg %p99
      // Predicated region
      $region9: #{tpu_custom_call.1} parent=5 // pred_check
        _
      $region10: #{tpu_custom_call.1} parent=5 // pred_check_branch
        %102 = sbr.rel (%p99) target = $region12
      $region11: #{tpu_custom_call.1} parent=5 // pred_region
        %s103 = ssub.s32 %s11, 1
      $region12: #{tpu_custom_call.1} parent=5 // pred_fallthru
        _
      %p104 = scmp.lt.s32.totalorder %s11, 2
      // Predicated region
      $region13: #{tpu_custom_call.1} parent=5 // pred_check
        %p105 = pneg %p104
      $region14: #{tpu_custom_call.1} parent=5 // pred_check_branch
        %107 = sbr.rel (%p105) target = $region16
      $region15: #{tpu_custom_call.1} parent=5 // pred_region
        // Predicated region
        $region17: #{tpu_custom_call.1} parent=15 // pred_check
          %p108 = pneg %p31
        $region18: #{tpu_custom_call.1} parent=15 // pred_check_branch
          %110 = sbr.rel (%p108) target = $region20
        $region19: #{tpu_custom_call.1} parent=15 // pred_region
          %s111 = smul.u32 4, %s11
          %p112 = scmp.lt.s32.totalorder %s111, 7
          %s113 = scalar_select %p112, %s111, 7
          %s114 = smul.addr %s113, 3
          %s115 = smul.addr %s114, 8
          %s116 = scalar_lea.vmem %s0, %s115
          %s117 = smul.u32 4, %s11
        $region20: #{tpu_custom_call.1} parent=15 // pred_fallthru
          _
        // Predicated region
        $region21: #{tpu_custom_call.1} parent=15 // pred_check
          %p118 = pneg %p57
        $region22: #{tpu_custom_call.1} parent=15 // pred_check_branch
          %120 = sbr.rel (%p118) target = $region24
        $region23: #{tpu_custom_call.1} parent=15 // pred_region
          %s121 = smul.u32 4, %s11
          %p122 = scmp.lt.s32.totalorder %s121, 7
          %s123 = scalar_select %p122, %s121, 7
          %s124 = smul.addr %s123, 3
          %s125 = smul.addr %s124, 8
          %s126 = scalar_lea.vmem %s1, %s125
          %s127 = smul.u32 4, %s11
        $region24: #{tpu_custom_call.1} parent=15 // pred_fallthru
          _
      $region16: #{tpu_custom_call.1} parent=5 // pred_fallthru
        _
      %p128 = scmp.le.s32.totalorder 1, %s11
      %p129 = scmp.lt.s32.totalorder %s11, 3
      %p130 = pnand %p128, %p129
      %p131 = pneg %p130
      // Predicated region
      $region25: #{tpu_custom_call.1} parent=5 // pred_check
        _
      $region26: #{tpu_custom_call.1} parent=5 // pred_check_branch
        %133 = sbr.rel (%p130) target = $region28
      $region27: #{tpu_custom_call.1} parent=5 // pred_region
        %s134 = ssub.s32 %s11, 1
        %s135 = smul.u32 4, %s16
        %p136 = scmp.lt.s32.totalorder %s135, 7
        %s137 = scalar_select %p136, %s135, 7
        %s138 = smul.addr %s137, 3
        %s139 = smul.addr %s138, 8
        %s140 = scalar_lea.vmem %s0, %s139
        %p141 = pneg %p37
        %p142 = pneg %p34
        %s143 = smul.u32 4, %s16
        %p144 = scmp.lt.s32.totalorder %s143, 7
        %s145 = scalar_select %p144, %s143, 7
        %s146 = smul.addr %s145, 3
        %s147 = smul.addr %s146, 8
        %s148 = scalar_lea.vmem %s1, %s147
        %p149 = pneg %p63
        %p150 = pneg %p60
        %p151 = pneg %p89
        %p152 = pneg %p86
        %s153 = sand.u32 %s76, 1
        %s154 = scalar_lea.sflag [#allocation3], %s153
        %s155 = sand.u32 %s76, 1
        %s156 = smul.addr %s155, 64
        %s157 = scalar_lea.vmem [#allocation2], %s156
        %s158 = smul.u32 4, %s16
        %p159 = scmp.lt.s32.totalorder %s158, 7
        %s160 = scalar_select %p159, %s158, 7
        %s161 = smul.addr %s160, 3
        %s162 = smul.addr %s161, 8
        %s163 = scalar_lea.vmem %s0, %s162
        %s164 = smul.u32 4, %s16
        %s165 = smul.u32 4, %s16
        %p166 = scmp.lt.s32.totalorder %s165, 7
        %s167 = scalar_select %p166, %s165, 7
        %s168 = smul.addr %s167, 3
        %s169 = smul.addr %s168, 8
        %s170 = scalar_lea.vmem %s1, %s169
        %s171 = smul.u32 4, %s16
        %s172 = smul.u32 4, %s16
        %v173 = vld [vmem:[%s163] sm:$0xff]
        %v174 = vld [vmem:[%s163 + $0x8] sm:$0xff]
        %v175 = vld [vmem:[%s163 + $0x10] sm:$0x3]
        %v176 = vld [vmem:[%s163 + $0x18] sm:$0xff]
        %v177 = vld [vmem:[%s163 + $0x20] sm:$0xff]
        %v178 = vld [vmem:[%s163 + $0x28] sm:$0x3]
        %v179 = vld [vmem:[%s163 + $0x30] sm:$0xff]
        %v180 = vld [vmem:[%s163 + $0x38] sm:$0xff]
        %v181 = vld [vmem:[%s163 + $0x40] sm:$0x3]
        %v182 = vld [vmem:[%s163 + $0x48] sm:$0xff]
        %v183 = vld [vmem:[%s163 + $0x50] sm:$0xff]
        %v184 = vld [vmem:[%s163 + $0x58] sm:$0x3]
        %v185 = vld [vmem:[%s170] sm:$0xff]
        %v186 = vld [vmem:[%s170 + $0x8] sm:$0xff]
        %v187 = vld [vmem:[%s170 + $0x10] sm:$0x3]
        %v188 = vld [vmem:[%s170 + $0x18] sm:$0xff]
        %v189 = vld [vmem:[%s170 + $0x20] sm:$0xff]
        %v190 = vld [vmem:[%s170 + $0x28] sm:$0x3]
        %v191 = vld [vmem:[%s170 + $0x30] sm:$0xff]
        %v192 = vld [vmem:[%s170 + $0x38] sm:$0xff]
        %v193 = vld [vmem:[%s170 + $0x40] sm:$0x3]
        %v194 = vld [vmem:[%s170 + $0x48] sm:$0xff]
        %v195 = vld [vmem:[%s170 + $0x50] sm:$0xff]
        %v196 = vld [vmem:[%s170 + $0x58] sm:$0x3]
        %209 = vrot.lane.b32.xlu0 %v173, 127
        %v210 = vpop.permute.xlu0 %209
        %211 = vrot.lane.b32.xlu0 %v174, 127
        %v212 = vpop.permute.xlu0 %211
        %213 = vrot.lane.b32.xlu0 %v175, 127
        %v214 = vpop.permute.xlu0 %213
        %215 = vrot.lane.b32.xlu0 %v176, 127
        %v216 = vpop.permute.xlu0 %215
        %217 = vrot.lane.b32.xlu0 %v177, 127
        %v218 = vpop.permute.xlu0 %217
        %219 = vrot.lane.b32.xlu0 %v178, 127
        %v220 = vpop.permute.xlu0 %219
        %221 = vrot.lane.b32.xlu0 %v179, 127
        %v222 = vpop.permute.xlu0 %221
        %223 = vrot.lane.b32.xlu0 %v180, 127
        %v224 = vpop.permute.xlu0 %223
        %225 = vrot.lane.b32.xlu0 %v181, 127
        %v226 = vpop.permute.xlu0 %225
        %227 = vrot.lane.b32.xlu0 %v182, 127
        %v228 = vpop.permute.xlu0 %227
        %229 = vrot.lane.b32.xlu0 %v183, 127
        %v230 = vpop.permute.xlu0 %229
        %231 = vrot.lane.b32.xlu0 %v184, 127
        %v232 = vpop.permute.xlu0 %231
        %v245 = vadd.f32 %v173, %v210
        %v246 = vadd.f32 %v174, %v212
        %v247 = vadd.f32 %v175, %v214
        %v248 = vadd.f32 %v176, %v216
        %v249 = vadd.f32 %v177, %v218
        %v250 = vadd.f32 %v178, %v220
        %v251 = vadd.f32 %v179, %v222
        %v252 = vadd.f32 %v180, %v224
        %v253 = vadd.f32 %v181, %v226
        %v254 = vadd.f32 %v182, %v228
        %v255 = vadd.f32 %v183, %v230
        %v256 = vadd.f32 %v184, %v232
        %257 = vrot.lane.b32.xlu0 %v173, 126
        %v258 = vpop.permute.xlu0 %257
        %259 = vrot.lane.b32.xlu0 %v174, 126
        %v260 = vpop.permute.xlu0 %259
        %261 = vrot.lane.b32.xlu0 %v175, 126
        %v262 = vpop.permute.xlu0 %261
        %263 = vrot.lane.b32.xlu0 %v176, 126
        %v264 = vpop.permute.xlu0 %263
        %265 = vrot.lane.b32.xlu0 %v177, 126
        %v266 = vpop.permute.xlu0 %265
        %267 = vrot.lane.b32.xlu0 %v178, 126
        %v268 = vpop.permute.xlu0 %267
        %269 = vrot.lane.b32.xlu0 %v179, 126
        %v270 = vpop.permute.xlu0 %269
        %271 = vrot.lane.b32.xlu0 %v180, 126
        %v272 = vpop.permute.xlu0 %271
        %273 = vrot.lane.b32.xlu0 %v181, 126
        %v274 = vpop.permute.xlu0 %273
        %275 = vrot.lane.b32.xlu0 %v182, 126
        %v276 = vpop.permute.xlu0 %275
        %277 = vrot.lane.b32.xlu0 %v183, 126
        %v278 = vpop.permute.xlu0 %277
        %279 = vrot.lane.b32.xlu0 %v184, 126
        %v280 = vpop.permute.xlu0 %279
        %v293 = vadd.f32 %v245, %v258
        %v294 = vadd.f32 %v246, %v260
        %v295 = vadd.f32 %v247, %v262
        %v296 = vadd.f32 %v248, %v264
        %v297 = vadd.f32 %v249, %v266
        %v298 = vadd.f32 %v250, %v268
        %v299 = vadd.f32 %v251, %v270
        %v300 = vadd.f32 %v252, %v272
        %v301 = vadd.f32 %v253, %v274
        %v302 = vadd.f32 %v254, %v276
        %v303 = vadd.f32 %v255, %v278
        %v304 = vadd.f32 %v256, %v280
        %vm317 = vcmask 1046528
        %v318 = vrot.slane %v293, 1
        %v319 = vrot.slane %v294, 1
        %v320 = vsel %vm317, %v318, %v319
        %v321 = vrot.slane %v295, 1
        %v322 = vsel %vm317, %v319, %v321
        %v323 = vrot.slane %v296, 1
        %v324 = vrot.slane %v297, 1
        %v325 = vsel %vm317, %v323, %v324
        %v326 = vrot.slane %v298, 1
        %v327 = vsel %vm317, %v324, %v326
        %v328 = vrot.slane %v299, 1
        %v329 = vrot.slane %v300, 1
        %v330 = vsel %vm317, %v328, %v329
        %v331 = vrot.slane %v301, 1
        %v332 = vsel %vm317, %v329, %v331
        %v333 = vrot.slane %v302, 1
        %v334 = vrot.slane %v303, 1
        %v335 = vsel %vm317, %v333, %v334
        %v336 = vrot.slane %v304, 1
        %v337 = vsel %vm317, %v334, %v336
        %v346 = vadd.f32 %v293, %v320
        %v347 = vadd.f32 %v294, %v322
        %v348 = vadd.f32 %v296, %v325
        %v349 = vadd.f32 %v297, %v327
        %v350 = vadd.f32 %v299, %v330
        %v351 = vadd.f32 %v300, %v332
        %v352 = vadd.f32 %v302, %v335
        %v353 = vadd.f32 %v303, %v337
        %vm354 = vcmask 1045504
        %v355 = vrot.slane %v293, 2
        %v356 = vrot.slane %v294, 2
        %v357 = vsel %vm354, %v355, %v356
        %v358 = vrot.slane %v295, 2
        %v359 = vsel %vm354, %v356, %v358
        %v360 = vrot.slane %v296, 2
        %v361 = vrot.slane %v297, 2
        %v362 = vsel %vm354, %v360, %v361
        %v363 = vrot.slane %v298, 2
        %v364 = vsel %vm354, %v361, %v363
        %v365 = vrot.slane %v299, 2
        %v366 = vrot.slane %v300, 2
        %v367 = vsel %vm354, %v365, %v366
        %v368 = vrot.slane %v301, 2
        %v369 = vsel %vm354, %v366, %v368
        %v370 = vrot.slane %v302, 2
        %v371 = vrot.slane %v303, 2
        %v372 = vsel %vm354, %v370, %v371
        %v373 = vrot.slane %v304, 2
        %v374 = vsel %vm354, %v371, %v373
        %v383 = vadd.f32 %v346, %v357
        %v384 = vadd.f32 %v347, %v359
        %v385 = vadd.f32 %v348, %v362
        %v386 = vadd.f32 %v349, %v364
        %v387 = vadd.f32 %v350, %v367
        %v388 = vadd.f32 %v351, %v369
        %v389 = vadd.f32 %v352, %v372
        %v390 = vadd.f32 %v353, %v374
        %403 = vrot.lane.b32.xlu0 %v185, 127
        %v404 = vpop.permute.xlu0 %403
        %405 = vrot.lane.b32.xlu0 %v186, 127
        %v406 = vpop.permute.xlu0 %405
        %407 = vrot.lane.b32.xlu0 %v187, 127
        %v408 = vpop.permute.xlu0 %407
        %409 = vrot.lane.b32.xlu0 %v188, 127
        %v410 = vpop.permute.xlu0 %409
        %411 = vrot.lane.b32.xlu0 %v189, 127
        %v412 = vpop.permute.xlu0 %411
        %413 = vrot.lane.b32.xlu0 %v190, 127
        %v414 = vpop.permute.xlu0 %413
        %415 = vrot.lane.b32.xlu0 %v191, 127
        %v416 = vpop.permute.xlu0 %415
        %417 = vrot.lane.b32.xlu0 %v192, 127
        %v418 = vpop.permute.xlu0 %417
        %419 = vrot.lane.b32.xlu0 %v193, 127
        %v420 = vpop.permute.xlu0 %419
        %421 = vrot.lane.b32.xlu0 %v194, 127
        %v422 = vpop.permute.xlu0 %421
        %423 = vrot.lane.b32.xlu0 %v195, 127
        %v424 = vpop.permute.xlu0 %423
        %425 = vrot.lane.b32.xlu0 %v196, 127
        %v426 = vpop.permute.xlu0 %425
        %v439 = vadd.f32 %v185, %v404
        %v440 = vadd.f32 %v186, %v406
        %v441 = vadd.f32 %v187, %v408
        %v442 = vadd.f32 %v188, %v410
        %v443 = vadd.f32 %v189, %v412
        %v444 = vadd.f32 %v190, %v414
        %v445 = vadd.f32 %v191, %v416
        %v446 = vadd.f32 %v192, %v418
        %v447 = vadd.f32 %v193, %v420
        %v448 = vadd.f32 %v194, %v422
        %v449 = vadd.f32 %v195, %v424
        %v450 = vadd.f32 %v196, %v426
        %451 = vrot.lane.b32.xlu0 %v185, 126
        %v452 = vpop.permute.xlu0 %451
        %453 = vrot.lane.b32.xlu0 %v186, 126
        %v454 = vpop.permute.xlu0 %453
        %455 = vrot.lane.b32.xlu0 %v187, 126
        %v456 = vpop.permute.xlu0 %455
        %457 = vrot.lane.b32.xlu0 %v188, 126
        %v458 = vpop.permute.xlu0 %457
        %459 = vrot.lane.b32.xlu0 %v189, 126
        %v460 = vpop.permute.xlu0 %459
        %461 = vrot.lane.b32.xlu0 %v190, 126
        %v462 = vpop.permute.xlu0 %461
        %463 = vrot.lane.b32.xlu0 %v191, 126
        %v464 = vpop.permute.xlu0 %463
        %465 = vrot.lane.b32.xlu0 %v192, 126
        %v466 = vpop.permute.xlu0 %465
        %467 = vrot.lane.b32.xlu0 %v193, 126
        %v468 = vpop.permute.xlu0 %467
        %469 = vrot.lane.b32.xlu0 %v194, 126
        %v470 = vpop.permute.xlu0 %469
        %471 = vrot.lane.b32.xlu0 %v195, 126
        %v472 = vpop.permute.xlu0 %471
        %473 = vrot.lane.b32.xlu0 %v196, 126
        %v474 = vpop.permute.xlu0 %473
        %v487 = vadd.f32 %v439, %v452
        %v488 = vadd.f32 %v440, %v454
        %v489 = vadd.f32 %v441, %v456
        %v490 = vadd.f32 %v442, %v458
        %v491 = vadd.f32 %v443, %v460
        %v492 = vadd.f32 %v444, %v462
        %v493 = vadd.f32 %v445, %v464
        %v494 = vadd.f32 %v446, %v466
        %v495 = vadd.f32 %v447, %v468
        %v496 = vadd.f32 %v448, %v470
        %v497 = vadd.f32 %v449, %v472
        %v498 = vadd.f32 %v450, %v474
        %v511 = vrot.slane %v487, 1
        %v512 = vrot.slane %v488, 1
        %v513 = vsel %vm317, %v511, %v512
        %v514 = vrot.slane %v489, 1
        %v515 = vsel %vm317, %v512, %v514
        %v516 = vrot.slane %v490, 1
        %v517 = vrot.slane %v491, 1
        %v518 = vsel %vm317, %v516, %v517
        %v519 = vrot.slane %v492, 1
        %v520 = vsel %vm317, %v517, %v519
        %v521 = vrot.slane %v493, 1
        %v522 = vrot.slane %v494, 1
        %v523 = vsel %vm317, %v521, %v522
        %v524 = vrot.slane %v495, 1
        %v525 = vsel %vm317, %v522, %v524
        %v526 = vrot.slane %v496, 1
        %v527 = vrot.slane %v497, 1
        %v528 = vsel %vm317, %v526, %v527
        %v529 = vrot.slane %v498, 1
        %v530 = vsel %vm317, %v527, %v529
        %v539 = vadd.f32 %v487, %v513
        %v540 = vadd.f32 %v488, %v515
        %v541 = vadd.f32 %v490, %v518
        %v542 = vadd.f32 %v491, %v520
        %v543 = vadd.f32 %v493, %v523
        %v544 = vadd.f32 %v494, %v525
        %v545 = vadd.f32 %v496, %v528
        %v546 = vadd.f32 %v497, %v530
        %v547 = vrot.slane %v487, 2
        %v548 = vrot.slane %v488, 2
        %v549 = vsel %vm354, %v547, %v548
        %v550 = vrot.slane %v489, 2
        %v551 = vsel %vm354, %v548, %v550
        %v552 = vrot.slane %v490, 2
        %v553 = vrot.slane %v491, 2
        %v554 = vsel %vm354, %v552, %v553
        %v555 = vrot.slane %v492, 2
        %v556 = vsel %vm354, %v553, %v555
        %v557 = vrot.slane %v493, 2
        %v558 = vrot.slane %v494, 2
        %v559 = vsel %vm354, %v557, %v558
        %v560 = vrot.slane %v495, 2
        %v561 = vsel %vm354, %v558, %v560
        %v562 = vrot.slane %v496, 2
        %v563 = vrot.slane %v497, 2
        %v564 = vsel %vm354, %v562, %v563
        %v565 = vrot.slane %v498, 2
        %v566 = vsel %vm354, %v563, %v565
        %v575 = vadd.f32 %v539, %v549
        %v576 = vadd.f32 %v540, %v551
        %v577 = vadd.f32 %v541, %v554
        %v578 = vadd.f32 %v542, %v556
        %v579 = vadd.f32 %v543, %v559
        %v580 = vadd.f32 %v544, %v561
        %v581 = vadd.f32 %v545, %v564
        %v582 = vadd.f32 %v546, %v566
        %v583 = vmul.f32 %v173, %v185
        %v584 = vmul.f32 %v174, %v186
        %v585 = vmul.f32 %v175, %v187
        %v586 = vmul.f32 %v176, %v188
        %v587 = vmul.f32 %v177, %v189
        %v588 = vmul.f32 %v178, %v190
        %v589 = vmul.f32 %v179, %v191
        %v590 = vmul.f32 %v180, %v192
        %v591 = vmul.f32 %v181, %v193
        %v592 = vmul.f32 %v182, %v194
        %v593 = vmul.f32 %v183, %v195
        %v594 = vmul.f32 %v184, %v196
        %607 = vrot.lane.b32.xlu0 %v583, 127
        %v608 = vpop.permute.xlu0 %607
        %609 = vrot.lane.b32.xlu0 %v584, 127
        %v610 = vpop.permute.xlu0 %609
        %611 = vrot.lane.b32.xlu0 %v585, 127
        %v612 = vpop.permute.xlu0 %611
        %613 = vrot.lane.b32.xlu0 %v586, 127
        %v614 = vpop.permute.xlu0 %613
        %615 = vrot.lane.b32.xlu0 %v587, 127
        %v616 = vpop.permute.xlu0 %615
        %617 = vrot.lane.b32.xlu0 %v588, 127
        %v618 = vpop.permute.xlu0 %617
        %619 = vrot.lane.b32.xlu0 %v589, 127
        %v620 = vpop.permute.xlu0 %619
        %621 = vrot.lane.b32.xlu0 %v590, 127
        %v622 = vpop.permute.xlu0 %621
        %623 = vrot.lane.b32.xlu0 %v591, 127
        %v624 = vpop.permute.xlu0 %623
        %625 = vrot.lane.b32.xlu0 %v592, 127
        %v626 = vpop.permute.xlu0 %625
        %627 = vrot.lane.b32.xlu0 %v593, 127
        %v628 = vpop.permute.xlu0 %627
        %629 = vrot.lane.b32.xlu0 %v594, 127
        %v630 = vpop.permute.xlu0 %629
        %v643 = vadd.f32 %v583, %v608
        %v644 = vadd.f32 %v584, %v610
        %v645 = vadd.f32 %v585, %v612
        %v646 = vadd.f32 %v586, %v614
        %v647 = vadd.f32 %v587, %v616
        %v648 = vadd.f32 %v588, %v618
        %v649 = vadd.f32 %v589, %v620
        %v650 = vadd.f32 %v590, %v622
        %v651 = vadd.f32 %v591, %v624
        %v652 = vadd.f32 %v592, %v626
        %v653 = vadd.f32 %v593, %v628
        %v654 = vadd.f32 %v594, %v630
        %655 = vrot.lane.b32.xlu0 %v583, 126
        %v656 = vpop.permute.xlu0 %655
        %657 = vrot.lane.b32.xlu0 %v584, 126
        %v658 = vpop.permute.xlu0 %657
        %659 = vrot.lane.b32.xlu0 %v585, 126
        %v660 = vpop.permute.xlu0 %659
        %661 = vrot.lane.b32.xlu0 %v586, 126
        %v662 = vpop.permute.xlu0 %661
        %663 = vrot.lane.b32.xlu0 %v587, 126
        %v664 = vpop.permute.xlu0 %663
        %665 = vrot.lane.b32.xlu0 %v588, 126
        %v666 = vpop.permute.xlu0 %665
        %667 = vrot.lane.b32.xlu0 %v589, 126
        %v668 = vpop.permute.xlu0 %667
        %669 = vrot.lane.b32.xlu0 %v590, 126
        %v670 = vpop.permute.xlu0 %669
        %671 = vrot.lane.b32.xlu0 %v591, 126
        %v672 = vpop.permute.xlu0 %671
        %673 = vrot.lane.b32.xlu0 %v592, 126
        %v674 = vpop.permute.xlu0 %673
        %675 = vrot.lane.b32.xlu0 %v593, 126
        %v676 = vpop.permute.xlu0 %675
        %677 = vrot.lane.b32.xlu0 %v594, 126
        %v678 = vpop.permute.xlu0 %677
        %v691 = vadd.f32 %v643, %v656
        %v692 = vadd.f32 %v644, %v658
        %v693 = vadd.f32 %v645, %v660
        %v694 = vadd.f32 %v646, %v662
        %v695 = vadd.f32 %v647, %v664
        %v696 = vadd.f32 %v648, %v666
        %v697 = vadd.f32 %v649, %v668
        %v698 = vadd.f32 %v650, %v670
        %v699 = vadd.f32 %v651, %v672
        %v700 = vadd.f32 %v652, %v674
        %v701 = vadd.f32 %v653, %v676
        %v702 = vadd.f32 %v654, %v678
        %v715 = vrot.slane %v691, 1
        %v716 = vrot.slane %v692, 1
        %v717 = vsel %vm317, %v715, %v716
        %v718 = vrot.slane %v693, 1
        %v719 = vsel %vm317, %v716, %v718
        %v720 = vrot.slane %v694, 1
        %v721 = vrot.slane %v695, 1
        %v722 = vsel %vm317, %v720, %v721
        %v723 = vrot.slane %v696, 1
        %v724 = vsel %vm317, %v721, %v723
        %v725 = vrot.slane %v697, 1
        %v726 = vrot.slane %v698, 1
        %v727 = vsel %vm317, %v725, %v726
        %v728 = vrot.slane %v699, 1
        %v729 = vsel %vm317, %v726, %v728
        %v730 = vrot.slane %v700, 1
        %v731 = vrot.slane %v701, 1
        %v732 = vsel %vm317, %v730, %v731
        %v733 = vrot.slane %v702, 1
        %v734 = vsel %vm317, %v731, %v733
        %v743 = vadd.f32 %v691, %v717
        %v744 = vadd.f32 %v692, %v719
        %v745 = vadd.f32 %v694, %v722
        %v746 = vadd.f32 %v695, %v724
        %v747 = vadd.f32 %v697, %v727
        %v748 = vadd.f32 %v698, %v729
        %v749 = vadd.f32 %v700, %v732
        %v750 = vadd.f32 %v701, %v734
        %v751 = vrot.slane %v691, 2
        %v752 = vrot.slane %v692, 2
        %v753 = vsel %vm354, %v751, %v752
        %v754 = vrot.slane %v693, 2
        %v755 = vsel %vm354, %v752, %v754
        %v756 = vrot.slane %v694, 2
        %v757 = vrot.slane %v695, 2
        %v758 = vsel %vm354, %v756, %v757
        %v759 = vrot.slane %v696, 2
        %v760 = vsel %vm354, %v757, %v759
        %v761 = vrot.slane %v697, 2
        %v762 = vrot.slane %v698, 2
        %v763 = vsel %vm354, %v761, %v762
        %v764 = vrot.slane %v699, 2
        %v765 = vsel %vm354, %v762, %v764
        %v766 = vrot.slane %v700, 2
        %v767 = vrot.slane %v701, 2
        %v768 = vsel %vm354, %v766, %v767
        %v769 = vrot.slane %v702, 2
        %v770 = vsel %vm354, %v767, %v769
        %v779 = vadd.f32 %v743, %v753
        %v780 = vadd.f32 %v744, %v755
        %v781 = vadd.f32 %v745, %v758
        %v782 = vadd.f32 %v746, %v760
        %v783 = vadd.f32 %v747, %v763
        %v784 = vadd.f32 %v748, %v765
        %v785 = vadd.f32 %v749, %v768
        %v786 = vadd.f32 %v750, %v770
        %v787 = vmul.f32 %v383, %v575
        %v788 = vmul.f32 %v384, %v576
        %v789 = vmul.f32 %v385, %v577
        %v790 = vmul.f32 %v386, %v578
        %v791 = vmul.f32 %v387, %v579
        %v792 = vmul.f32 %v388, %v580
        %v793 = vmul.f32 %v389, %v581
        %v794 = vmul.f32 %v390, %v582
        %v795 = vmul.f32 %v787, 2.0
        %v796 = vmul.f32 %v788, 2.0
        %v797 = vmul.f32 %v789, 2.0
        %v798 = vmul.f32 %v790, 2.0
        %v799 = vmul.f32 %v791, 2.0
        %v800 = vmul.f32 %v792, 2.0
        %v801 = vmul.f32 %v793, 2.0
        %v802 = vmul.f32 %v794, 2.0
        %v803 = vadd.f32 %v795, 0.0081
        %v804 = vadd.f32 %v796, 0.0081
        %v805 = vadd.f32 %v797, 0.0081
        %v806 = vadd.f32 %v798, 0.0081
        %v807 = vadd.f32 %v799, 0.0081
        %v808 = vadd.f32 %v800, 0.0081
        %v809 = vadd.f32 %v801, 0.0081
        %v810 = vadd.f32 %v802, 0.0081
        %v811 = vmul.f32 %v779, 18.0
        %v812 = vmul.f32 %v780, 18.0
        %v813 = vmul.f32 %v781, 18.0
        %v814 = vmul.f32 %v782, 18.0
        %v815 = vmul.f32 %v783, 18.0
        %v816 = vmul.f32 %v784, 18.0
        %v817 = vmul.f32 %v785, 18.0
        %v818 = vmul.f32 %v786, 18.0
        %v819 = vsub.f32 %v811, %v795
        %v820 = vsub.f32 %v812, %v796
        %v821 = vsub.f32 %v813, %v797
        %v822 = vsub.f32 %v814, %v798
        %v823 = vsub.f32 %v815, %v799
        %v824 = vsub.f32 %v816, %v800
        %v825 = vsub.f32 %v817, %v801
        %v826 = vsub.f32 %v818, %v802
        %v827 = vadd.f32 %v819, 0.0729
        %v828 = vadd.f32 %v820, 0.0729
        %v829 = vadd.f32 %v821, 0.0729
        %v830 = vadd.f32 %v822, 0.0729
        %v831 = vadd.f32 %v823, 0.0729
        %v832 = vadd.f32 %v824, 0.0729
        %v833 = vadd.f32 %v825, 0.0729
        %v834 = vadd.f32 %v826, 0.0729
        %v835 = vmul.f32 %v803, %v827
        %v836 = vmul.f32 %v804, %v828
        %v837 = vmul.f32 %v805, %v829
        %v838 = vmul.f32 %v806, %v830
        %v839 = vmul.f32 %v807, %v831
        %v840 = vmul.f32 %v808, %v832
        %v841 = vmul.f32 %v809, %v833
        %v842 = vmul.f32 %v810, %v834
        %v843 = vmul.f32 %v383, %v383
        %v844 = vmul.f32 %v384, %v384
        %v845 = vmul.f32 %v385, %v385
        %v846 = vmul.f32 %v386, %v386
        %v847 = vmul.f32 %v387, %v387
        %v848 = vmul.f32 %v388, %v388
        %v849 = vmul.f32 %v389, %v389
        %v850 = vmul.f32 %v390, %v390
        %v851 = vmul.f32 %v575, %v575
        %v852 = vmul.f32 %v576, %v576
        %v853 = vmul.f32 %v577, %v577
        %v854 = vmul.f32 %v578, %v578
        %v855 = vmul.f32 %v579, %v579
        %v856 = vmul.f32 %v580, %v580
        %v857 = vmul.f32 %v581, %v581
        %v858 = vmul.f32 %v582, %v582
        %v859 = vadd.f32 %v843, %v851
        %v860 = vadd.f32 %v844, %v852
        %v861 = vadd.f32 %v845, %v853
        %v862 = vadd.f32 %v846, %v854
        %v863 = vadd.f32 %v847, %v855
        %v864 = vadd.f32 %v848, %v856
        %v865 = vadd.f32 %v849, %v857
        %v866 = vadd.f32 %v850, %v858
        %v867 = vmul.f32 %v173, %v173
        %v868 = vmul.f32 %v174, %v174
        %v869 = vmul.f32 %v175, %v175
        %v870 = vmul.f32 %v176, %v176
        %v871 = vmul.f32 %v177, %v177
        %v872 = vmul.f32 %v178, %v178
        %v873 = vmul.f32 %v179, %v179
        %v874 = vmul.f32 %v180, %v180
        %v875 = vmul.f32 %v181, %v181
        %v876 = vmul.f32 %v182, %v182
        %v877 = vmul.f32 %v183, %v183
        %v878 = vmul.f32 %v184, %v184
        %891 = vrot.lane.b32.xlu0 %v867, 127
        %v892 = vpop.permute.xlu0 %891
        %893 = vrot.lane.b32.xlu0 %v868, 127
        %v894 = vpop.permute.xlu0 %893
        %895 = vrot.lane.b32.xlu0 %v869, 127
        %v896 = vpop.permute.xlu0 %895
        %897 = vrot.lane.b32.xlu0 %v870, 127
        %v898 = vpop.permute.xlu0 %897
        %899 = vrot.lane.b32.xlu0 %v871, 127
        %v900 = vpop.permute.xlu0 %899
        %901 = vrot.lane.b32.xlu0 %v872, 127
        %v902 = vpop.permute.xlu0 %901
        %903 = vrot.lane.b32.xlu0 %v873, 127
        %v904 = vpop.permute.xlu0 %903
        %905 = vrot.lane.b32.xlu0 %v874, 127
        %v906 = vpop.permute.xlu0 %905
        %907 = vrot.lane.b32.xlu0 %v875, 127
        %v908 = vpop.permute.xlu0 %907
        %909 = vrot.lane.b32.xlu0 %v876, 127
        %v910 = vpop.permute.xlu0 %909
        %911 = vrot.lane.b32.xlu0 %v877, 127
        %v912 = vpop.permute.xlu0 %911
        %913 = vrot.lane.b32.xlu0 %v878, 127
        %v914 = vpop.permute.xlu0 %913
        %v927 = vadd.f32 %v867, %v892
        %v928 = vadd.f32 %v868, %v894
        %v929 = vadd.f32 %v869, %v896
        %v930 = vadd.f32 %v870, %v898
        %v931 = vadd.f32 %v871, %v900
        %v932 = vadd.f32 %v872, %v902
        %v933 = vadd.f32 %v873, %v904
        %v934 = vadd.f32 %v874, %v906
        %v935 = vadd.f32 %v875, %v908
        %v936 = vadd.f32 %v876, %v910
        %v937 = vadd.f32 %v877, %v912
        %v938 = vadd.f32 %v878, %v914
        %939 = vrot.lane.b32.xlu0 %v867, 126
        %v940 = vpop.permute.xlu0 %939
        %941 = vrot.lane.b32.xlu0 %v868, 126
        %v942 = vpop.permute.xlu0 %941
        %943 = vrot.lane.b32.xlu0 %v869, 126
        %v944 = vpop.permute.xlu0 %943
        %945 = vrot.lane.b32.xlu0 %v870, 126
        %v946 = vpop.permute.xlu0 %945
        %947 = vrot.lane.b32.xlu0 %v871, 126
        %v948 = vpop.permute.xlu0 %947
        %949 = vrot.lane.b32.xlu0 %v872, 126
        %v950 = vpop.permute.xlu0 %949
        %951 = vrot.lane.b32.xlu0 %v873, 126
        %v952 = vpop.permute.xlu0 %951
        %953 = vrot.lane.b32.xlu0 %v874, 126
        %v954 = vpop.permute.xlu0 %953
        %955 = vrot.lane.b32.xlu0 %v875, 126
        %v956 = vpop.permute.xlu0 %955
        %957 = vrot.lane.b32.xlu0 %v876, 126
        %v958 = vpop.permute.xlu0 %957
        %959 = vrot.lane.b32.xlu0 %v877, 126
        %v960 = vpop.permute.xlu0 %959
        %961 = vrot.lane.b32.xlu0 %v878, 126
        %v962 = vpop.permute.xlu0 %961
        %v975 = vadd.f32 %v927, %v940
        %v976 = vadd.f32 %v928, %v942
        %v977 = vadd.f32 %v929, %v944
        %v978 = vadd.f32 %v930, %v946
        %v979 = vadd.f32 %v931, %v948
        %v980 = vadd.f32 %v932, %v950
        %v981 = vadd.f32 %v933, %v952
        %v982 = vadd.f32 %v934, %v954
        %v983 = vadd.f32 %v935, %v956
        %v984 = vadd.f32 %v936, %v958
        %v985 = vadd.f32 %v937, %v960
        %v986 = vadd.f32 %v938, %v962
        %v999 = vrot.slane %v975, 1
        %v1000 = vrot.slane %v976, 1
        %v1001 = vsel %vm317, %v999, %v1000
        %v1002 = vrot.slane %v977, 1
        %v1003 = vsel %vm317, %v1000, %v1002
        %v1004 = vrot.slane %v978, 1
        %v1005 = vrot.slane %v979, 1
        %v1006 = vsel %vm317, %v1004, %v1005
        %v1007 = vrot.slane %v980, 1
        %v1008 = vsel %vm317, %v1005, %v1007
        %v1009 = vrot.slane %v981, 1
        %v1010 = vrot.slane %v982, 1
        %v1011 = vsel %vm317, %v1009, %v1010
        %v1012 = vrot.slane %v983, 1
        %v1013 = vsel %vm317, %v1010, %v1012
        %v1014 = vrot.slane %v984, 1
        %v1015 = vrot.slane %v985, 1
        %v1016 = vsel %vm317, %v1014, %v1015
        %v1017 = vrot.slane %v986, 1
        %v1018 = vsel %vm317, %v1015, %v1017
        %v1027 = vadd.f32 %v975, %v1001
        %v1028 = vadd.f32 %v976, %v1003
        %v1029 = vadd.f32 %v978, %v1006
        %v1030 = vadd.f32 %v979, %v1008
        %v1031 = vadd.f32 %v981, %v1011
        %v1032 = vadd.f32 %v982, %v1013
        %v1033 = vadd.f32 %v984, %v1016
        %v1034 = vadd.f32 %v985, %v1018
        %v1035 = vrot.slane %v975, 2
        %v1036 = vrot.slane %v976, 2
        %v1037 = vsel %vm354, %v1035, %v1036
        %v1038 = vrot.slane %v977, 2
        %v1039 = vsel %vm354, %v1036, %v1038
        %v1040 = vrot.slane %v978, 2
        %v1041 = vrot.slane %v979, 2
        %v1042 = vsel %vm354, %v1040, %v1041
        %v1043 = vrot.slane %v980, 2
        %v1044 = vsel %vm354, %v1041, %v1043
        %v1045 = vrot.slane %v981, 2
        %v1046 = vrot.slane %v982, 2
        %v1047 = vsel %vm354, %v1045, %v1046
        %v1048 = vrot.slane %v983, 2
        %v1049 = vsel %vm354, %v1046, %v1048
        %v1050 = vrot.slane %v984, 2
        %v1051 = vrot.slane %v985, 2
        %v1052 = vsel %vm354, %v1050, %v1051
        %v1053 = vrot.slane %v986, 2
        %v1054 = vsel %vm354, %v1051, %v1053
        %v1063 = vadd.f32 %v1027, %v1037
        %v1064 = vadd.f32 %v1028, %v1039
        %v1065 = vadd.f32 %v1029, %v1042
        %v1066 = vadd.f32 %v1030, %v1044
        %v1067 = vadd.f32 %v1031, %v1047
        %v1068 = vadd.f32 %v1032, %v1049
        %v1069 = vadd.f32 %v1033, %v1052
        %v1070 = vadd.f32 %v1034, %v1054
        %v1071 = vmul.f32 %v185, %v185
        %v1072 = vmul.f32 %v186, %v186
        %v1073 = vmul.f32 %v187, %v187
        %v1074 = vmul.f32 %v188, %v188
        %v1075 = vmul.f32 %v189, %v189
        %v1076 = vmul.f32 %v190, %v190
        %v1077 = vmul.f32 %v191, %v191
        %v1078 = vmul.f32 %v192, %v192
        %v1079 = vmul.f32 %v193, %v193
        %v1080 = vmul.f32 %v194, %v194
        %v1081 = vmul.f32 %v195, %v195
        %v1082 = vmul.f32 %v196, %v196
        %1095 = vrot.lane.b32.xlu0 %v1071, 127
        %v1096 = vpop.permute.xlu0 %1095
        %1097 = vrot.lane.b32.xlu0 %v1072, 127
        %v1098 = vpop.permute.xlu0 %1097
        %1099 = vrot.lane.b32.xlu0 %v1073, 127
        %v1100 = vpop.permute.xlu0 %1099
        %1101 = vrot.lane.b32.xlu0 %v1074, 127
        %v1102 = vpop.permute.xlu0 %1101
        %1103 = vrot.lane.b32.xlu0 %v1075, 127
        %v1104 = vpop.permute.xlu0 %1103
        %1105 = vrot.lane.b32.xlu0 %v1076, 127
        %v1106 = vpop.permute.xlu0 %1105
        %1107 = vrot.lane.b32.xlu0 %v1077, 127
        %v1108 = vpop.permute.xlu0 %1107
        %1109 = vrot.lane.b32.xlu0 %v1078, 127
        %v1110 = vpop.permute.xlu0 %1109
        %1111 = vrot.lane.b32.xlu0 %v1079, 127
        %v1112 = vpop.permute.xlu0 %1111
        %1113 = vrot.lane.b32.xlu0 %v1080, 127
        %v1114 = vpop.permute.xlu0 %1113
        %1115 = vrot.lane.b32.xlu0 %v1081, 127
        %v1116 = vpop.permute.xlu0 %1115
        %1117 = vrot.lane.b32.xlu0 %v1082, 127
        %v1118 = vpop.permute.xlu0 %1117
        %v1131 = vadd.f32 %v1071, %v1096
        %v1132 = vadd.f32 %v1072, %v1098
        %v1133 = vadd.f32 %v1073, %v1100
        %v1134 = vadd.f32 %v1074, %v1102
        %v1135 = vadd.f32 %v1075, %v1104
        %v1136 = vadd.f32 %v1076, %v1106
        %v1137 = vadd.f32 %v1077, %v1108
        %v1138 = vadd.f32 %v1078, %v1110
        %v1139 = vadd.f32 %v1079, %v1112
        %v1140 = vadd.f32 %v1080, %v1114
        %v1141 = vadd.f32 %v1081, %v1116
        %v1142 = vadd.f32 %v1082, %v1118
        %1143 = vrot.lane.b32.xlu0 %v1071, 126
        %v1144 = vpop.permute.xlu0 %1143
        %1145 = vrot.lane.b32.xlu0 %v1072, 126
        %v1146 = vpop.permute.xlu0 %1145
        %1147 = vrot.lane.b32.xlu0 %v1073, 126
        %v1148 = vpop.permute.xlu0 %1147
        %1149 = vrot.lane.b32.xlu0 %v1074, 126
        %v1150 = vpop.permute.xlu0 %1149
        %1151 = vrot.lane.b32.xlu0 %v1075, 126
        %v1152 = vpop.permute.xlu0 %1151
        %1153 = vrot.lane.b32.xlu0 %v1076, 126
        %v1154 = vpop.permute.xlu0 %1153
        %1155 = vrot.lane.b32.xlu0 %v1077, 126
        %v1156 = vpop.permute.xlu0 %1155
        %1157 = vrot.lane.b32.xlu0 %v1078, 126
        %v1158 = vpop.permute.xlu0 %1157
        %1159 = vrot.lane.b32.xlu0 %v1079, 126
        %v1160 = vpop.permute.xlu0 %1159
        %1161 = vrot.lane.b32.xlu0 %v1080, 126
        %v1162 = vpop.permute.xlu0 %1161
        %1163 = vrot.lane.b32.xlu0 %v1081, 126
        %v1164 = vpop.permute.xlu0 %1163
        %1165 = vrot.lane.b32.xlu0 %v1082, 126
        %v1166 = vpop.permute.xlu0 %1165
        %v1179 = vadd.f32 %v1131, %v1144
        %v1180 = vadd.f32 %v1132, %v1146
        %v1181 = vadd.f32 %v1133, %v1148
        %v1182 = vadd.f32 %v1134, %v1150
        %v1183 = vadd.f32 %v1135, %v1152
        %v1184 = vadd.f32 %v1136, %v1154
        %v1185 = vadd.f32 %v1137, %v1156
        %v1186 = vadd.f32 %v1138, %v1158
        %v1187 = vadd.f32 %v1139, %v1160
        %v1188 = vadd.f32 %v1140, %v1162
        %v1189 = vadd.f32 %v1141, %v1164
        %v1190 = vadd.f32 %v1142, %v1166
        %v1203 = vrot.slane %v1179, 1
        %v1204 = vrot.slane %v1180, 1
        %v1205 = vsel %vm317, %v1203, %v1204
        %v1206 = vrot.slane %v1181, 1
        %v1207 = vsel %vm317, %v1204, %v1206
        %v1208 = vrot.slane %v1182, 1
        %v1209 = vrot.slane %v1183, 1
        %v1210 = vsel %vm317, %v1208, %v1209
        %v1211 = vrot.slane %v1184, 1
        %v1212 = vsel %vm317, %v1209, %v1211
        %v1213 = vrot.slane %v1185, 1
        %v1214 = vrot.slane %v1186, 1
        %v1215 = vsel %vm317, %v1213, %v1214
        %v1216 = vrot.slane %v1187, 1
        %v1217 = vsel %vm317, %v1214, %v1216
        %v1218 = vrot.slane %v1188, 1
        %v1219 = vrot.slane %v1189, 1
        %v1220 = vsel %vm317, %v1218, %v1219
        %v1221 = vrot.slane %v1190, 1
        %v1222 = vsel %vm317, %v1219, %v1221
        %v1231 = vadd.f32 %v1179, %v1205
        %v1232 = vadd.f32 %v1180, %v1207
        %v1233 = vadd.f32 %v1182, %v1210
        %v1234 = vadd.f32 %v1183, %v1212
        %v1235 = vadd.f32 %v1185, %v1215
        %v1236 = vadd.f32 %v1186, %v1217
        %v1237 = vadd.f32 %v1188, %v1220
        %v1238 = vadd.f32 %v1189, %v1222
        %v1239 = vrot.slane %v1179, 2
        %v1240 = vrot.slane %v1180, 2
        %v1241 = vsel %vm354, %v1239, %v1240
        %v1242 = vrot.slane %v1181, 2
        %v1243 = vsel %vm354, %v1240, %v1242
        %v1244 = vrot.slane %v1182, 2
        %v1245 = vrot.slane %v1183, 2
        %v1246 = vsel %vm354, %v1244, %v1245
        %v1247 = vrot.slane %v1184, 2
        %v1248 = vsel %vm354, %v1245, %v1247
        %v1249 = vrot.slane %v1185, 2
        %v1250 = vrot.slane %v1186, 2
        %v1251 = vsel %vm354, %v1249, %v1250
        %v1252 = vrot.slane %v1187, 2
        %v1253 = vsel %vm354, %v1250, %v1252
        %v1254 = vrot.slane %v1188, 2
        %v1255 = vrot.slane %v1189, 2
        %v1256 = vsel %vm354, %v1254, %v1255
        %v1257 = vrot.slane %v1190, 2
        %v1258 = vsel %vm354, %v1255, %v1257
        %v1267 = vadd.f32 %v1231, %v1241
        %v1268 = vadd.f32 %v1232, %v1243
        %v1269 = vadd.f32 %v1233, %v1246
        %v1270 = vadd.f32 %v1234, %v1248
        %v1271 = vadd.f32 %v1235, %v1251
        %v1272 = vadd.f32 %v1236, %v1253
        %v1273 = vadd.f32 %v1237, %v1256
        %v1274 = vadd.f32 %v1238, %v1258
        %v1275 = vadd.f32 %v1063, %v1267
        %v1276 = vadd.f32 %v1064, %v1268
        %v1277 = vadd.f32 %v1065, %v1269
        %v1278 = vadd.f32 %v1066, %v1270
        %v1279 = vadd.f32 %v1067, %v1271
        %v1280 = vadd.f32 %v1068, %v1272
        %v1281 = vadd.f32 %v1069, %v1273
        %v1282 = vadd.f32 %v1070, %v1274
        %v1283 = vadd.f32 %v859, 0.0081
        %v1284 = vadd.f32 %v860, 0.0081
        %v1285 = vadd.f32 %v861, 0.0081
        %v1286 = vadd.f32 %v862, 0.0081
        %v1287 = vadd.f32 %v863, 0.0081
        %v1288 = vadd.f32 %v864, 0.0081
        %v1289 = vadd.f32 %v865, 0.0081
        %v1290 = vadd.f32 %v866, 0.0081
        %v1291 = vmul.f32 %v1275, 9.0
        %v1292 = vmul.f32 %v1276, 9.0
        %v1293 = vmul.f32 %v1277, 9.0
        %v1294 = vmul.f32 %v1278, 9.0
        %v1295 = vmul.f32 %v1279, 9.0
        %v1296 = vmul.f32 %v1280, 9.0
        %v1297 = vmul.f32 %v1281, 9.0
        %v1298 = vmul.f32 %v1282, 9.0
        %v1299 = vsub.f32 %v1291, %v859
        %v1300 = vsub.f32 %v1292, %v860
        %v1301 = vsub.f32 %v1293, %v861
        %v1302 = vsub.f32 %v1294, %v862
        %v1303 = vsub.f32 %v1295, %v863
        %v1304 = vsub.f32 %v1296, %v864
        %v1305 = vsub.f32 %v1297, %v865
        %v1306 = vsub.f32 %v1298, %v866
        %v1307 = vadd.f32 %v1299, 0.0729
        %v1308 = vadd.f32 %v1300, 0.0729
        %v1309 = vadd.f32 %v1301, 0.0729
        %v1310 = vadd.f32 %v1302, 0.0729
        %v1311 = vadd.f32 %v1303, 0.0729
        %v1312 = vadd.f32 %v1304, 0.0729
        %v1313 = vadd.f32 %v1305, 0.0729
        %v1314 = vadd.f32 %v1306, 0.0729
        %v1315 = vmul.f32 %v1283, %v1307
        %v1316 = vmul.f32 %v1284, %v1308
        %v1317 = vmul.f32 %v1285, %v1309
        %v1318 = vmul.f32 %v1286, %v1310
        %v1319 = vmul.f32 %v1287, %v1311
        %v1320 = vmul.f32 %v1288, %v1312
        %v1321 = vmul.f32 %v1289, %v1313
        %v1322 = vmul.f32 %v1290, %v1314
        %v1323 = vmul.f32 %v835, 0.5
        %v1324 = vmul.f32 %v836, 0.5
        %v1325 = vmul.f32 %v837, 0.5
        %v1326 = vmul.f32 %v838, 0.5
        %v1327 = vmul.f32 %v839, 0.5
        %v1328 = vmul.f32 %v840, 0.5
        %v1329 = vmul.f32 %v841, 0.5
        %v1330 = vmul.f32 %v842, 0.5
        %v1331 = vrcp.pop %v1315
        %v1332 = vrcp.pop %v1316
        %v1333 = vrcp.pop %v1317
        %v1334 = vrcp.pop %v1318
        %v1335 = vrcp.pop %v1319
        %v1336 = vrcp.pop %v1320
        %v1337 = vrcp.pop %v1321
        %v1338 = vrcp.pop %v1322
        %v1339 = vmul.f32 %v1323, %v1331
        %v1340 = vmul.f32 %v1324, %v1332
        %v1341 = vmul.f32 %v1325, %v1333
        %v1342 = vmul.f32 %v1326, %v1334
        %v1343 = vmul.f32 %v1327, %v1335
        %v1344 = vmul.f32 %v1328, %v1336
        %v1345 = vmul.f32 %v1329, %v1337
        %v1346 = vmul.f32 %v1330, %v1338
        %v1347 = vsub.f32 0.5, %v1339
        %v1348 = vsub.f32 0.5, %v1340
        %v1349 = vsub.f32 0.5, %v1341
        %v1350 = vsub.f32 0.5, %v1342
        %v1351 = vsub.f32 0.5, %v1343
        %v1352 = vsub.f32 0.5, %v1344
        %v1353 = vsub.f32 0.5, %v1345
        %v1354 = vsub.f32 0.5, %v1346
        %v1355 = vmax.f32 %v1347, 0.0
        %v1356 = vmax.f32 %v1348, 0.0
        %v1357 = vmax.f32 %v1349, 0.0
        %v1358 = vmax.f32 %v1350, 0.0
        %v1359 = vmax.f32 %v1351, 0.0
        %v1360 = vmax.f32 %v1352, 0.0
        %v1361 = vmax.f32 %v1353, 0.0
        %v1362 = vmax.f32 %v1354, 0.0
        %v1363 = vmin.f32 %v1355, 1.0
        %v1364 = vmin.f32 %v1356, 1.0
        %v1365 = vmin.f32 %v1357, 1.0
        %v1366 = vmin.f32 %v1358, 1.0
        %v1367 = vmin.f32 %v1359, 1.0
        %v1368 = vmin.f32 %v1360, 1.0
        %v1369 = vmin.f32 %v1361, 1.0
        %v1370 = vmin.f32 %v1362, 1.0
        %vm1371 = vcmask 130048
        %1372 = vst.msk [vmem:[%s157] sm:$0xff] %vm1371, %v1363
        %1373 = vst.msk [vmem:[%s157 + $0x8] sm:$0xff] %vm1371, %v1364
        %1374 = vst.msk [vmem:[%s157 + $0x10] sm:$0xff] %vm1371, %v1365
        %1375 = vst.msk [vmem:[%s157 + $0x18] sm:$0xff] %vm1371, %v1366
        %1376 = vst.msk [vmem:[%s157 + $0x20] sm:$0xff] %vm1371, %v1367
        %1377 = vst.msk [vmem:[%s157 + $0x28] sm:$0xff] %vm1371, %v1368
        %1378 = vst.msk [vmem:[%s157 + $0x30] sm:$0xff] %vm1371, %v1369
        %1379 = vst.msk [vmem:[%s157 + $0x38] sm:$0xff] %vm1371, %v1370
        %s1380 = sand.u32 %s76, 1
        %s1381 = scalar_lea.sflag [#allocation3], %s1380
        %s1382 = sand.u32 %s76, 1
        %s1383 = smul.addr %s1382, 64
        %s1384 = scalar_lea.vmem [#allocation2], %s1383
        // Predicated region
        $region29: #{tpu_custom_call.1} parent=27 // pred_check
          %p1385 = pneg %p86
        $region30: #{tpu_custom_call.1} parent=27 // pred_check_branch
          %1387 = sbr.rel (%p1385) target = $region32
        $region31: #{tpu_custom_call.1} parent=27 // pred_region
          %s1388 = smul.u32 4, %s16
          %s1390 = ssub.s32 1024, 1024
          %1391 = vsyncadd %s1381, %s1390
          %s1392 = smul.addr %s1388, 2
          %s1393 = smul.addr %s1392, 128
          %s1394 = scalar_lea.hbm %s2, %s1393
          %s1395 = sshll.u32 %s1384, 4
          %s1396 = int_to_ptr.vmem [resolvable:$true] %s1395
          %1401 = dma.vmem_to_hbm [thread:$0]  %s1396, 1024, %s1394, %s1381, 128, 128, 8
        $region32: #{tpu_custom_call.1} parent=27 // pred_fallthru
          _
      $region28: #{tpu_custom_call.1} parent=5 // pred_fallthru
        _
      %p1402 = scmp.le.s32.totalorder 2, %s11
      // Predicated region
      $region33: #{tpu_custom_call.1} parent=5 // pred_check
        %p1403 = pneg %p1402
      $region34: #{tpu_custom_call.1} parent=5 // pred_check_branch
        %1405 = sbr.rel (%p1403) target = $region36
      $region35: #{tpu_custom_call.1} parent=5 // pred_region
        %s1406 = ssub.s32 %s11, 2
        // Predicated region
        $region37: #{tpu_custom_call.1} parent=35 // pred_check
          %p1407 = pneg %p92
        $region38: #{tpu_custom_call.1} parent=35 // pred_check_branch
          %1409 = sbr.rel (%p1407) target = $region40
        $region39: #{tpu_custom_call.1} parent=35 // pred_region
          %s1410 = sand.u32 %s77, 1
          %s1411 = scalar_lea.sflag [#allocation3], %s1410
          %s1412 = sand.u32 %s77, 1
          %s1413 = smul.addr %s1412, 64
          %s1414 = scalar_lea.vmem [#allocation2], %s1413
          %1415 = dma.done %s1411, 1024
        $region40: #{tpu_custom_call.1} parent=35 // pred_fallthru
          _
      $region36: #{tpu_custom_call.1} parent=5 // pred_fallthru
        _
    $region6: #{tpu_custom_call.1} parent=1 // loop_footer
      %s15 = sadd.s32 1, %s11
    $region7: #{tpu_custom_call.1} parent=1 // loop_footer_branch
      %10 = sbr.rel target = $region3
    $region8: #{tpu_custom_call.1} parent=1 // loop_exit
      _
    %1416 = vsyncpa [#allocation3], 1
    %s1417 = scalar_lea.sflag [#allocation3], 1
    %1418 = vsyncpa %s1417, 1

</llo_original>
